<compile_context>
chip_gen: v6e
topology: v6e:2x2x1
jax: 0.10.0
libtpu: 0.0.40
codegen_flags: <defaults>
</compile_context>

<pallas_src>
import functools

import jax
import jax.numpy as jnp
from jax.experimental import pallas as pl
from jax.experimental.pallas import tpu as pltpu


def mlp_kernel(x_ref, w1_ref, b1_ref, w2_ref, b2_ref, w3_ref, b3_ref, o_ref):
    # fc1 + ReLU  (bf16 MXU inputs, f32 accumulate, f32 elementwise)
    x = x_ref[...].astype(jnp.bfloat16)
    h1 = jnp.dot(x, w1_ref[...], preferred_element_type=jnp.float32)
    h1 = jnp.maximum(h1 + b1_ref[...], 0.0)
    # fc2 + ReLU
    h2 = jnp.dot(h1.astype(jnp.bfloat16), w2_ref[...],
                 preferred_element_type=jnp.float32)
    h2 = jnp.maximum(h2 + b2_ref[...], 0.0)
    # fc3 + Sigmoid
    logits = jnp.dot(h2.astype(jnp.bfloat16), w3_ref[...],
                     preferred_element_type=jnp.float32)
    logits = logits + b3_ref[...]
    o_ref[...] = jax.nn.sigmoid(logits).astype(o_ref.dtype)


@functools.partial(jax.jit, static_argnames=("max_tile_b",))
def mlp_forward(x, params, *, max_tile_b=256):
    w1, b1, w2, b2, w3, b3 = params
    B, in_size = x.shape
    h1_size = w1.shape[1]
    h2_size = w2.shape[1]
    out_size = w3.shape[1]

    # Cast weights to bf16 once, outside the kernel (activations cast inside).
    w1b = w1.astype(jnp.bfloat16)
    w2b = w2.astype(jnp.bfloat16)
    w3b = w3.astype(jnp.bfloat16)

    # Batch tile: MXU-friendly 256 for big batches, multiple-of-8 for tiny ones.
    def _round_up(n, m):
        return ((n + m - 1) // m) * m

    tile_b = min(max_tile_b, _round_up(B, 8))
    b_pad = _round_up(B, tile_b)
    if b_pad != B:
        x = jnp.pad(x, ((0, b_pad - B), (0, 0)))
    grid = (b_pad // tile_b,)

    # x / out tiled over the batch grid; weights & biases are grid-invariant
    # (index_map -> (0, 0)) so they are DMA'd into VMEM exactly once.
    x_spec = pl.BlockSpec((tile_b, in_size), lambda i: (i, 0))
    w1_spec = pl.BlockSpec((in_size, h1_size), lambda i: (0, 0))
    b1_spec = pl.BlockSpec((1, h1_size), lambda i: (0, 0))
    w2_spec = pl.BlockSpec((h1_size, h2_size), lambda i: (0, 0))
    b2_spec = pl.BlockSpec((1, h2_size), lambda i: (0, 0))
    w3_spec = pl.BlockSpec((h2_size, out_size), lambda i: (0, 0))
    b3_spec = pl.BlockSpec((1, out_size), lambda i: (0, 0))
    out_spec = pl.BlockSpec((tile_b, out_size), lambda i: (i, 0))

    flops = 2 * b_pad * (in_size * h1_size + h1_size * h2_size
                         + h2_size * out_size)
    bytes_accessed = (
        x.size * x.dtype.itemsize
        + w1b.size * 2 + w2b.size * 2 + w3b.size * 2
        + (b1.size + b2.size + b3.size) * 4
        + b_pad * out_size * 4
    )
    cost = pl.CostEstimate(flops=flops,
                           bytes_accessed=bytes_accessed,
                           transcendentals=b_pad * out_size)

    out = pl.pallas_call(
        mlp_kernel,
        out_shape=jax.ShapeDtypeStruct((b_pad, out_size), jnp.float32),
        grid=grid,
        in_specs=[x_spec, w1_spec, b1_spec, w2_spec, b2_spec, w3_spec, b3_spec],
        out_specs=out_spec,
        compiler_params=pltpu.CompilerParams(
            dimension_semantics=("parallel",)),
        cost_estimate=cost,
    )(x, w1b, b1, w2b, b2, w3b, b3)

    return out[:B]


def init_linear(key, fan_in, fan_out):
    # Mirror torch.nn.Linear default init: U(-1/sqrt(fan_in), 1/sqrt(fan_in)).
    kw, kb = jax.random.split(key)
    bound = 1.0 / jnp.sqrt(fan_in)
    w = jax.random.uniform(kw, (fan_in, fan_out), jnp.float32, -bound, bound)
    b = jax.random.uniform(kb, (1, fan_out), jnp.float32, -bound, bound)
    return w, b


if __name__ == "__main__":
    input_size = 32
    output_size = 16
    hidden1 = 512
    hidden2 = 256
    batch = 8

    key = jax.random.PRNGKey(0)
    kx, k1, k2, k3 = jax.random.split(key, 4)

    x = jax.random.normal(kx, (batch, input_size), jnp.float32)
    w1, b1 = init_linear(k1, input_size, hidden1)
    w2, b2 = init_linear(k2, hidden1, hidden2)
    w3, b3 = init_linear(k3, hidden2, output_size)
    params = (w1, b1, w2, b2, w3, b3)

    out = mlp_forward(x, params)
    jax.block_until_ready(out)

    # Pure-JAX f32 reference check (kernel uses bf16 MXU inputs -> loose tol).
    h = jnp.maximum(x @ w1 + b1, 0.0)
    h = jnp.maximum(h @ w2 + b2, 0.0)
    ref = jax.nn.sigmoid(h @ w3 + b3)
    assert out.shape == (batch, output_size)
    assert jnp.allclose(out, ref, atol=2e-2, rtol=2e-2), (
        float(jnp.max(jnp.abs(out - ref))))

    print("KERNEL_OK")
</pallas_src>

<mosaic_0001>
module attributes {stable_mosaic.version = 11 : i64} {
  func.func @mlp_kernel(%arg0: i32, %arg1: memref<8x32xf32, #tpu.memory_space<vmem>>, %arg2: memref<32x512xbf16, #tpu.memory_space<vmem>>, %arg3: memref<1x512xf32, #tpu.memory_space<vmem>>, %arg4: memref<512x256xbf16, #tpu.memory_space<vmem>>, %arg5: memref<1x256xf32, #tpu.memory_space<vmem>>, %arg6: memref<256x16xbf16, #tpu.memory_space<vmem>>, %arg7: memref<1x16xf32, #tpu.memory_space<vmem>>, %arg8: memref<8x16xf32, #tpu.memory_space<vmem>>) attributes {dimension_semantics = [#tpu.dimension_semantics<parallel>], iteration_bounds = array<i64: 1>, scalar_prefetch = 0 : i64, scratch_operands = 0 : i64, tpu.core_type = #tpu.core_type<tc>, window_params = [{transform_indices = @transform_0, window_bounds = array<i64: 8, 32>}, {pipeline_mode = #tpu.pipeline_mode<synchronous>, transform_indices = @transform_1, window_bounds = array<i64: 32, 512>}, {pipeline_mode = #tpu.pipeline_mode<synchronous>, transform_indices = @transform_2, window_bounds = array<i64: 1, 512>}, {pipeline_mode = #tpu.pipeline_mode<synchronous>, transform_indices = @transform_3, window_bounds = array<i64: 512, 256>}, {pipeline_mode = #tpu.pipeline_mode<synchronous>, transform_indices = @transform_4, window_bounds = array<i64: 1, 256>}, {pipeline_mode = #tpu.pipeline_mode<synchronous>, transform_indices = @transform_5, window_bounds = array<i64: 256, 16>}, {pipeline_mode = #tpu.pipeline_mode<synchronous>, transform_indices = @transform_6, window_bounds = array<i64: 1, 16>}, {transform_indices = @transform_7, window_bounds = array<i64: 8, 16>}]} {
    %c0 = arith.constant 0 : index
    %c0_0 = arith.constant 0 : index
    %0 = vector.load %arg1[%c0, %c0_0] : memref<8x32xf32, #tpu.memory_space<vmem>>, vector<8x32xf32>
    %1 = arith.truncf %0 : vector<8x32xf32> to vector<8x32xbf16>
    %c0_1 = arith.constant 0 : index
    %c0_2 = arith.constant 0 : index
    %2 = vector.load %arg2[%c0_1, %c0_2] : memref<32x512xbf16, #tpu.memory_space<vmem>>, vector<32x512xbf16>
    %cst = arith.constant dense<0.000000e+00> : vector<8x512xf32>
    %3 = tpu.matmul %1, %2, %cst {dimension_numbers = #tpu.dot_dimension_numbers<[1], [0], [0], [1], [0, 0, 1, 1], [], []>} : vector<8x32xbf16>, vector<32x512xbf16>, vector<8x512xf32> -> vector<8x512xf32>
    %c0_3 = arith.constant 0 : index
    %c0_4 = arith.constant 0 : index
    %4 = vector.load %arg3[%c0_3, %c0_4] : memref<1x512xf32, #tpu.memory_space<vmem>>, vector<1x512xf32>
    %5 = vector.broadcast %4 : vector<1x512xf32> to vector<8x512xf32>
    %6 = arith.addf %3, %5 : vector<8x512xf32>
    %cst_5 = arith.constant 0.000000e+00 : f32
    %7 = vector.broadcast %cst_5 : f32 to vector<8x512xf32>
    %8 = arith.maximumf %6, %7 : vector<8x512xf32>
    %9 = arith.truncf %8 : vector<8x512xf32> to vector<8x512xbf16>
    %c0_6 = arith.constant 0 : index
    %c0_7 = arith.constant 0 : index
    %10 = vector.load %arg4[%c0_6, %c0_7] : memref<512x256xbf16, #tpu.memory_space<vmem>>, vector<512x256xbf16>
    %cst_8 = arith.constant dense<0.000000e+00> : vector<8x256xf32>
    %11 = tpu.matmul %9, %10, %cst_8 {dimension_numbers = #tpu.dot_dimension_numbers<[1], [0], [0], [1], [0, 0, 1, 1], [], []>} : vector<8x512xbf16>, vector<512x256xbf16>, vector<8x256xf32> -> vector<8x256xf32>
    %c0_9 = arith.constant 0 : index
    %c0_10 = arith.constant 0 : index
    %12 = vector.load %arg5[%c0_9, %c0_10] : memref<1x256xf32, #tpu.memory_space<vmem>>, vector<1x256xf32>
    %13 = vector.broadcast %12 : vector<1x256xf32> to vector<8x256xf32>
    %14 = arith.addf %11, %13 : vector<8x256xf32>
    %cst_11 = arith.constant 0.000000e+00 : f32
    %15 = vector.broadcast %cst_11 : f32 to vector<8x256xf32>
    %16 = arith.maximumf %14, %15 : vector<8x256xf32>
    %17 = arith.truncf %16 : vector<8x256xf32> to vector<8x256xbf16>
    %c0_12 = arith.constant 0 : index
    %c0_13 = arith.constant 0 : index
    %18 = vector.load %arg6[%c0_12, %c0_13] : memref<256x16xbf16, #tpu.memory_space<vmem>>, vector<256x16xbf16>
    %cst_14 = arith.constant dense<0.000000e+00> : vector<8x16xf32>
    %19 = tpu.matmul %17, %18, %cst_14 {dimension_numbers = #tpu.dot_dimension_numbers<[1], [0], [0], [1], [0, 0, 1, 1], [], []>} : vector<8x256xbf16>, vector<256x16xbf16>, vector<8x16xf32> -> vector<8x16xf32>
    %c0_15 = arith.constant 0 : index
    %c0_16 = arith.constant 0 : index
    %20 = vector.load %arg7[%c0_15, %c0_16] : memref<1x16xf32, #tpu.memory_space<vmem>>, vector<1x16xf32>
    %21 = vector.broadcast %20 : vector<1x16xf32> to vector<8x16xf32>
    %22 = arith.addf %19, %21 : vector<8x16xf32>
    %23 = arith.negf %22 : vector<8x16xf32>
    %24 = math.exp %23 : vector<8x16xf32>
    %cst_17 = arith.constant 1.000000e+00 : f32
    %25 = vector.broadcast %cst_17 : f32 to vector<8x16xf32>
    %26 = arith.addf %25, %24 : vector<8x16xf32>
    %27 = arith.divf %25, %26 : vector<8x16xf32>
    %c0_18 = arith.constant 0 : index
    %c0_19 = arith.constant 0 : index
    %28 = vector.load %arg8[%c0_18, %c0_19] : memref<8x16xf32, #tpu.memory_space<vmem>>, vector<8x16xf32>
    tpu.vector_store %arg8[%c0_18, %c0_19], %27 {strides = array<i32>} : memref<8x16xf32, #tpu.memory_space<vmem>>, vector<8x16xf32>,
    return
  }
  func.func @transform_0(%arg0: i32) -> (i32, i32) {
    %c0_i32 = arith.constant 0 : i32
    %c0_i32_0 = arith.constant 0 : i32
    return %arg0, %c0_i32 : i32, i32
  }
  func.func @transform_1(%arg0: i32) -> (i32, i32) {
    %c0_i32 = arith.constant 0 : i32
    %c0_i32_0 = arith.constant 0 : i32
    %c0_i32_1 = arith.constant 0 : i32
    return %c0_i32, %c0_i32_0 : i32, i32
  }
  func.func @transform_2(%arg0: i32) -> (i32, i32) {
    %c0_i32 = arith.constant 0 : i32
    %c0_i32_0 = arith.constant 0 : i32
    %c0_i32_1 = arith.constant 0 : i32
    return %c0_i32, %c0_i32_0 : i32, i32
  }
  func.func @transform_3(%arg0: i32) -> (i32, i32) {
    %c0_i32 = arith.constant 0 : i32
    %c0_i32_0 = arith.constant 0 : i32
    %c0_i32_1 = arith.constant 0 : i32
    return %c0_i32, %c0_i32_0 : i32, i32
  }
  func.func @transform_4(%arg0: i32) -> (i32, i32) {
    %c0_i32 = arith.constant 0 : i32
    %c0_i32_0 = arith.constant 0 : i32
    %c0_i32_1 = arith.constant 0 : i32
    return %c0_i32, %c0_i32_0 : i32, i32
  }
  func.func @transform_5(%arg0: i32) -> (i32, i32) {
    %c0_i32 = arith.constant 0 : i32
    %c0_i32_0 = arith.constant 0 : i32
    %c0_i32_1 = arith.constant 0 : i32
    return %c0_i32, %c0_i32_0 : i32, i32
  }
  func.func @transform_6(%arg0: i32) -> (i32, i32) {
    %c0_i32 = arith.constant 0 : i32
    %c0_i32_0 = arith.constant 0 : i32
    %c0_i32_1 = arith.constant 0 : i32
    return %c0_i32, %c0_i32_0 : i32, i32
  }
  func.func @transform_7(%arg0: i32) -> (i32, i32) {
    %c0_i32 = arith.constant 0 : i32
    %c0_i32_0 = arith.constant 0 : i32
    return %arg0, %c0_i32 : i32, i32
  }
}

</mosaic_0001>

<llo_original>
// kernel: mlp_forward.1
$region0: #{mlp_forward.1}
  #allocation0 [shape = 'u32[]', space=smem, size = 0x4, offset = 0x4, fixed_abs, tag = 'smem constant byte address 0x4 - core index']
  #allocation1 [shape = 'u32[144,128]{1,0:T(1,128)}', space=vmem, size = 0x12000, scoped, tag = 'internal scratch']
  %s0 = inlined_call_operand.vmem [shape: f32[8,32], index: 0, kind: input, shape index: {}]
  %s1 = inlined_call_operand.vmem [shape: bf16[32,512], index: 1, kind: input, shape index: {}]
  %s2 = inlined_call_operand.vmem [shape: f32[1,512], index: 2, kind: input, shape index: {}]
  %s3 = inlined_call_operand.vmem [shape: bf16[512,256], index: 3, kind: input, shape index: {}]
  %s4 = inlined_call_operand.vmem [shape: f32[1,256], index: 4, kind: input, shape index: {}]
  %s5 = inlined_call_operand.vmem [shape: bf16[256,16], index: 5, kind: input, shape index: {}]
  %s6 = inlined_call_operand.vmem [shape: f32[1,16], index: 6, kind: input, shape index: {}]
  %s7 = inlined_call_operand.hbm [shape: f32[8,16], index: 7, kind: output, shape index: {}]
  %s8 = sld [smem:[#allocation0]]
  $region38: #{mlp_forward.1} parent=0
    _
  %s10 = ssub.s32 1, %s8
  %s11 = scalar_select 0, %s10, %s8
  $region1: #{mlp_forward.1} parent=0
    #allocation2 [shape = 'u8[4096]{0}', space=vmem, size = 0x1000, scoped, tag = 'output window, operand 0, single buffered']
    #allocation3 [shape = 's32[1]{0}', space=sflag, size = 0x4, scoped, tag = 'scoped memory for mlp_forward.1']
    %12 = vsyncpa [#allocation3], 0
    // Predicated region
    $region2: #{mlp_forward.1} parent=1 // pred_check
      _
    $region3: #{mlp_forward.1} parent=1 // pred_check_branch
      %14 = sbr.rel (0) target = $region5
    $region4: #{mlp_forward.1} parent=1 // pred_region
      _
    $region5: #{mlp_forward.1} parent=1 // pred_fallthru
      _
    // Predicated region
    $region6: #{mlp_forward.1} parent=1 // pred_check
      _
    $region7: #{mlp_forward.1} parent=1 // pred_check_branch
      %16 = sbr.rel (0) target = $region9
    $region8: #{mlp_forward.1} parent=1 // pred_region
      _
    $region9: #{mlp_forward.1} parent=1 // pred_fallthru
      _
    // Predicated region
    $region10: #{mlp_forward.1} parent=1 // pred_check
      _
    $region11: #{mlp_forward.1} parent=1 // pred_check_branch
      %18 = sbr.rel (0) target = $region13
    $region12: #{mlp_forward.1} parent=1 // pred_region
      _
    $region13: #{mlp_forward.1} parent=1 // pred_fallthru
      _
    // Predicated region
    $region14: #{mlp_forward.1} parent=1 // pred_check
      _
    $region15: #{mlp_forward.1} parent=1 // pred_check_branch
      %20 = sbr.rel (0) target = $region17
    $region16: #{mlp_forward.1} parent=1 // pred_region
      _
    $region17: #{mlp_forward.1} parent=1 // pred_fallthru
      _
    // Predicated region
    $region18: #{mlp_forward.1} parent=1 // pred_check
      _
    $region19: #{mlp_forward.1} parent=1 // pred_check_branch
      %22 = sbr.rel (0) target = $region21
    $region20: #{mlp_forward.1} parent=1 // pred_region
      _
    $region21: #{mlp_forward.1} parent=1 // pred_fallthru
      _
    // Predicated region
    $region22: #{mlp_forward.1} parent=1 // pred_check
      _
    $region23: #{mlp_forward.1} parent=1 // pred_check_branch
      %24 = sbr.rel (0) target = $region25
    $region24: #{mlp_forward.1} parent=1 // pred_region
      _
    $region25: #{mlp_forward.1} parent=1 // pred_fallthru
      _
    // Predicated region
    $region26: #{mlp_forward.1} parent=1 // pred_check
      _
    $region27: #{mlp_forward.1} parent=1 // pred_check_branch
      %26 = sbr.rel (0) target = $region29
    $region28: #{mlp_forward.1} parent=1 // pred_region
      _
    $region29: #{mlp_forward.1} parent=1 // pred_fallthru
      _
    %v28 = vld [vmem:[%s0] sm:$0xff]
    %v29 = vpack.c.bf16 %v28, %v28
    %v30 = vld [vmem:[%s1] sm:$0xff]
    %v31 = vld [vmem:[%s1 + $0x8] sm:$0xff]
    %v32 = vld [vmem:[%s1 + $0x10] sm:$0xff]
    %v33 = vld [vmem:[%s1 + $0x18] sm:$0xff]
    %v34 = vld [vmem:[%s1 + $0x20] sm:$0xff]
    %v35 = vld [vmem:[%s1 + $0x28] sm:$0xff]
    %v36 = vld [vmem:[%s1 + $0x30] sm:$0xff]
    %v37 = vld [vmem:[%s1 + $0x38] sm:$0xff]
    %v38 = vld [vmem:[%s2] sm:$0xf]
    %v40 = vlaneseq
    %v41 = vshrl.u32 %v40, 7
    %v42 = vsub.s32 0, %v41
    %v43 = vrot.slane %v38, %v42
    %v44 = vlaneseq
    %v45 = vshrl.u32 %v44, 7
    %v46 = vsub.s32 1, %v45
    %v47 = vrot.slane %v38, %v46
    %v48 = vlaneseq
    %v49 = vshrl.u32 %v48, 7
    %v50 = vsub.s32 2, %v49
    %v51 = vrot.slane %v38, %v50
    %v52 = vlaneseq
    %v53 = vshrl.u32 %v52, 7
    %v54 = vsub.s32 3, %v53
    %v55 = vrot.slane %v38, %v54
    %v68 = vunpack.c.l.b16 %v30
    %v69 = vunpack.c.h.b16 %v30
    %v70 = vunpack.c.l.b16 %v31
    %v71 = vunpack.c.h.b16 %v31
    %v72 = vunpack.c.l.b16 %v32
    %v73 = vunpack.c.h.b16 %v32
    %v74 = vunpack.c.l.b16 %v33
    %v75 = vunpack.c.h.b16 %v33
    %v76 = vunpack.c.l.b16 %v34
    %v77 = vunpack.c.h.b16 %v34
    %v78 = vunpack.c.l.b16 %v35
    %v79 = vunpack.c.h.b16 %v35
    %v80 = vunpack.c.l.b16 %v36
    %v81 = vunpack.c.h.b16 %v36
    %v82 = vunpack.c.l.b16 %v37
    %v83 = vunpack.c.h.b16 %v37
    %v84 = vpack.c.b16 %v72, %v68
    %v85 = vpack.c.b16 %v73, %v69
    %v86 = vpack.c.b16 %v74, %v70
    %v87 = vpack.c.b16 %v75, %v71
    %v88 = vpack.c.b16 %v80, %v76
    %v89 = vpack.c.b16 %v81, %v77
    %v90 = vpack.c.b16 %v82, %v78
    %v91 = vpack.c.b16 %v83, %v79
    %vm100 = vcmask 261120
    %v102 = vsel %vm100, %v29, 0
    %104 = vmatprep.subr.bf16.mxu0 0
    %105 = vmatpush1.bf16.msra.mxu0 0
    %106 = vmatprep.subr.bf16.mxu0 0
    %107 = vmatpush1.bf16.msra.mxu0 0
    %108 = vmatprep.subr.bf16.mxu0 0
    %109 = vmatpush1.bf16.msra.mxu0 0
    %110 = vmatprep.subr.bf16.mxu0 0
    %111 = vmatpush1.bf16.msra.mxu0 0
    %112 = vmatprep.subr.bf16.mxu0 0
    %113 = vmatpush1.bf16.msra.mxu0 0
    %114 = vmatprep.subr.bf16.mxu0 0
    %115 = vmatpush1.bf16.msra.mxu0 0
    %116 = vmatprep.subr.bf16.mxu0 %v89
    %117 = vmatpush1.bf16.msra.mxu0 %v88
    %118 = vmatprep.subr.bf16.mxu0 %v85
    %119 = vmatpush1.bf16.msra.mxu0 %v84
    %120 = vmatprep.subr.bf16.mxu0 0
    %121 = vmatpush2.bf16.msra.mxu0 0
    %122 = vmatprep.subr.bf16.mxu0 0
    %123 = vmatpush2.bf16.msra.mxu0 0
    %124 = vmatprep.subr.bf16.mxu0 0
    %125 = vmatpush2.bf16.msra.mxu0 0
    %126 = vmatprep.subr.bf16.mxu0 0
    %127 = vmatpush2.bf16.msra.mxu0 0
    %128 = vmatprep.subr.bf16.mxu0 0
    %129 = vmatpush2.bf16.msra.mxu0 0
    %130 = vmatprep.subr.bf16.mxu0 0
    %131 = vmatpush2.bf16.msra.mxu0 0
    %132 = vmatprep.subr.bf16.mxu0 0
    %133 = vmatpush2.bf16.msra.mxu0 0
    %134 = vmatprep.subr.bf16.mxu0 0
    %135 = vmatpush2.bf16.msra.mxu0 0
    %136 = vmatprep.mubr.bf16.mxu0 0
    %137 = vmatmul.mubr.bf16.gmra.mxu0 %v102
    %v138 = vpop.f32.mrf.mxu0
    %v139 = vadd.f32 %v43, %v138
    %v140 = vpop.f32.mrf.mxu0
    %v141 = vadd.f32 %v47, %v140
    %v142 = vpop.f32.mrf.mxu0
    %v143 = vpop.f32.mrf.mxu0
    %144 = vdwg.mxu0
    %145 = vmatprep.subr.bf16.mxu0 0
    %146 = vmatpush1.bf16.msra.mxu0 0
    %147 = vmatprep.subr.bf16.mxu0 0
    %148 = vmatpush1.bf16.msra.mxu0 0
    %149 = vmatprep.subr.bf16.mxu0 0
    %150 = vmatpush1.bf16.msra.mxu0 0
    %151 = vmatprep.subr.bf16.mxu0 0
    %152 = vmatpush1.bf16.msra.mxu0 0
    %153 = vmatprep.subr.bf16.mxu0 0
    %154 = vmatpush1.bf16.msra.mxu0 0
    %155 = vmatprep.subr.bf16.mxu0 0
    %156 = vmatpush1.bf16.msra.mxu0 0
    %157 = vmatprep.subr.bf16.mxu0 %v91
    %158 = vmatpush1.bf16.msra.mxu0 %v90
    %159 = vmatprep.subr.bf16.mxu0 %v87
    %160 = vmatpush1.bf16.msra.mxu0 %v86
    %161 = vmatprep.subr.bf16.mxu0 0
    %162 = vmatpush2.bf16.msra.mxu0 0
    %163 = vmatprep.subr.bf16.mxu0 0
    %164 = vmatpush2.bf16.msra.mxu0 0
    %165 = vmatprep.subr.bf16.mxu0 0
    %166 = vmatpush2.bf16.msra.mxu0 0
    %167 = vmatprep.subr.bf16.mxu0 0
    %168 = vmatpush2.bf16.msra.mxu0 0
    %169 = vmatprep.subr.bf16.mxu0 0
    %170 = vmatpush2.bf16.msra.mxu0 0
    %171 = vmatprep.subr.bf16.mxu0 0
    %172 = vmatpush2.bf16.msra.mxu0 0
    %173 = vmatprep.subr.bf16.mxu0 0
    %174 = vmatpush2.bf16.msra.mxu0 0
    %175 = vmatprep.subr.bf16.mxu0 0
    %176 = vmatpush2.bf16.msra.mxu0 0
    %177 = vmatprep.mubr.bf16.mxu0 0
    %178 = vmatmul.mubr.bf16.gmra.mxu0 %v102
    %v179 = vpop.f32.mrf.mxu0
    %v180 = vadd.f32 %v51, %v179
    %v181 = vpop.f32.mrf.mxu0
    %v182 = vadd.f32 %v55, %v181
    %v183 = vpop.f32.mrf.mxu0
    %v184 = vpop.f32.mrf.mxu0
    %185 = vdwg.mxu0
    %v186 = vmax.f32 %v139, 0.0
    %v187 = vmax.f32 %v141, 0.0
    %v188 = vmax.f32 %v180, 0.0
    %v189 = vmax.f32 %v182, 0.0
    %v190 = vpack.c.bf16 %v186, %v186
    %v191 = vpack.c.bf16 %v187, %v187
    %v192 = vpack.c.bf16 %v188, %v188
    %v193 = vpack.c.bf16 %v189, %v189
    %v194 = vld [vmem:[%s3] sm:$0xff]
    %v195 = vld [vmem:[%s3 + $0x8] sm:$0xff]
    %v196 = vld [vmem:[%s3 + $0x10] sm:$0xff]
    %v197 = vld [vmem:[%s3 + $0x18] sm:$0xff]
    %v198 = vld [vmem:[%s3 + $0x20] sm:$0xff]
    %v199 = vld [vmem:[%s3 + $0x28] sm:$0xff]
    %v200 = vld [vmem:[%s3 + $0x30] sm:$0xff]
    %v201 = vld [vmem:[%s3 + $0x38] sm:$0xff]
    %v202 = vld [vmem:[%s3 + $0x40] sm:$0xff]
    %v203 = vld [vmem:[%s3 + $0x48] sm:$0xff]
    %v204 = vld [vmem:[%s3 + $0x50] sm:$0xff]
    %v205 = vld [vmem:[%s3 + $0x58] sm:$0xff]
    %v206 = vld [vmem:[%s3 + $0x60] sm:$0xff]
    %v207 = vld [vmem:[%s3 + $0x68] sm:$0xff]
    %v208 = vld [vmem:[%s3 + $0x70] sm:$0xff]
    %v209 = vld [vmem:[%s3 + $0x78] sm:$0xff]
    %v210 = vld [vmem:[%s3 + $0x80] sm:$0xff]
    %v211 = vld [vmem:[%s3 + $0x88] sm:$0xff]
    %v212 = vld [vmem:[%s3 + $0x90] sm:$0xff]
    %v213 = vld [vmem:[%s3 + $0x98] sm:$0xff]
    %v214 = vld [vmem:[%s3 + $0xa0] sm:$0xff]
    %v215 = vld [vmem:[%s3 + $0xa8] sm:$0xff]
    %v216 = vld [vmem:[%s3 + $0xb0] sm:$0xff]
    %v217 = vld [vmem:[%s3 + $0xb8] sm:$0xff]
    %v218 = vld [vmem:[%s3 + $0xc0] sm:$0xff]
    %v219 = vld [vmem:[%s3 + $0xc8] sm:$0xff]
    %v220 = vld [vmem:[%s3 + $0xd0] sm:$0xff]
    %v221 = vld [vmem:[%s3 + $0xd8] sm:$0xff]
    %v222 = vld [vmem:[%s3 + $0xe0] sm:$0xff]
    %v223 = vld [vmem:[%s3 + $0xe8] sm:$0xff]
    %v224 = vld [vmem:[%s3 + $0xf0] sm:$0xff]
    %v225 = vld [vmem:[%s3 + $0xf8] sm:$0xff]
    %v226 = vld [vmem:[%s3 + $0x100] sm:$0xff]
    %v227 = vld [vmem:[%s3 + $0x108] sm:$0xff]
    %v228 = vld [vmem:[%s3 + $0x110] sm:$0xff]
    %v229 = vld [vmem:[%s3 + $0x118] sm:$0xff]
    %v230 = vld [vmem:[%s3 + $0x120] sm:$0xff]
    %v231 = vld [vmem:[%s3 + $0x128] sm:$0xff]
    %v232 = vld [vmem:[%s3 + $0x130] sm:$0xff]
    %v233 = vld [vmem:[%s3 + $0x138] sm:$0xff]
    %v234 = vld [vmem:[%s3 + $0x140] sm:$0xff]
    %v235 = vld [vmem:[%s3 + $0x148] sm:$0xff]
    %v236 = vld [vmem:[%s3 + $0x150] sm:$0xff]
    %v237 = vld [vmem:[%s3 + $0x158] sm:$0xff]
    %v238 = vld [vmem:[%s3 + $0x160] sm:$0xff]
    %v239 = vld [vmem:[%s3 + $0x168] sm:$0xff]
    %v240 = vld [vmem:[%s3 + $0x170] sm:$0xff]
    %v241 = vld [vmem:[%s3 + $0x178] sm:$0xff]
    %v242 = vld [vmem:[%s3 + $0x180] sm:$0xff]
    %v243 = vld [vmem:[%s3 + $0x188] sm:$0xff]
    %v244 = vld [vmem:[%s3 + $0x190] sm:$0xff]
    %v245 = vld [vmem:[%s3 + $0x198] sm:$0xff]
    %v246 = vld [vmem:[%s3 + $0x1a0] sm:$0xff]
    %v247 = vld [vmem:[%s3 + $0x1a8] sm:$0xff]
    %v248 = vld [vmem:[%s3 + $0x1b0] sm:$0xff]
    %v249 = vld [vmem:[%s3 + $0x1b8] sm:$0xff]
    %v250 = vld [vmem:[%s3 + $0x1c0] sm:$0xff]
    %v251 = vld [vmem:[%s3 + $0x1c8] sm:$0xff]
    %v252 = vld [vmem:[%s3 + $0x1d0] sm:$0xff]
    %v253 = vld [vmem:[%s3 + $0x1d8] sm:$0xff]
    %v254 = vld [vmem:[%s3 + $0x1e0] sm:$0xff]
    %v255 = vld [vmem:[%s3 + $0x1e8] sm:$0xff]
    %v256 = vld [vmem:[%s3 + $0x1f0] sm:$0xff]
    %v257 = vld [vmem:[%s3 + $0x1f8] sm:$0xff]
    %v258 = vld [vmem:[%s4] sm:$0x3]
    %v260 = vlaneseq
    %v261 = vshrl.u32 %v260, 7
    %v262 = vsub.s32 0, %v261
    %v263 = vrot.slane %v258, %v262
    %v264 = vlaneseq
    %v265 = vshrl.u32 %v264, 7
    %v266 = vsub.s32 1, %v265
    %v267 = vrot.slane %v258, %v266
    %v334 = vunpack.c.l.b16 %v194
    %v335 = vunpack.c.h.b16 %v194
    %v336 = vunpack.c.l.b16 %v195
    %v337 = vunpack.c.h.b16 %v195
    %v338 = vunpack.c.l.b16 %v196
    %v339 = vunpack.c.h.b16 %v196
    %v340 = vunpack.c.l.b16 %v197
    %v341 = vunpack.c.h.b16 %v197
    %v342 = vunpack.c.l.b16 %v198
    %v343 = vunpack.c.h.b16 %v198
    %v344 = vunpack.c.l.b16 %v199
    %v345 = vunpack.c.h.b16 %v199
    %v346 = vunpack.c.l.b16 %v200
    %v347 = vunpack.c.h.b16 %v200
    %v348 = vunpack.c.l.b16 %v201
    %v349 = vunpack.c.h.b16 %v201
    %v350 = vunpack.c.l.b16 %v202
    %v351 = vunpack.c.h.b16 %v202
    %v352 = vunpack.c.l.b16 %v203
    %v353 = vunpack.c.h.b16 %v203
    %v354 = vunpack.c.l.b16 %v204
    %v355 = vunpack.c.h.b16 %v204
    %v356 = vunpack.c.l.b16 %v205
    %v357 = vunpack.c.h.b16 %v205
    %v358 = vunpack.c.l.b16 %v206
    %v359 = vunpack.c.h.b16 %v206
    %v360 = vunpack.c.l.b16 %v207
    %v361 = vunpack.c.h.b16 %v207
    %v362 = vunpack.c.l.b16 %v208
    %v363 = vunpack.c.h.b16 %v208
    %v364 = vunpack.c.l.b16 %v209
    %v365 = vunpack.c.h.b16 %v209
    %v366 = vunpack.c.l.b16 %v210
    %v367 = vunpack.c.h.b16 %v210
    %v368 = vunpack.c.l.b16 %v211
    %v369 = vunpack.c.h.b16 %v211
    %v370 = vunpack.c.l.b16 %v212
    %v371 = vunpack.c.h.b16 %v212
    %v372 = vunpack.c.l.b16 %v213
    %v373 = vunpack.c.h.b16 %v213
    %v374 = vunpack.c.l.b16 %v214
    %v375 = vunpack.c.h.b16 %v214
    %v376 = vunpack.c.l.b16 %v215
    %v377 = vunpack.c.h.b16 %v215
    %v378 = vunpack.c.l.b16 %v216
    %v379 = vunpack.c.h.b16 %v216
    %v380 = vunpack.c.l.b16 %v217
    %v381 = vunpack.c.h.b16 %v217
    %v382 = vunpack.c.l.b16 %v218
    %v383 = vunpack.c.h.b16 %v218
    %v384 = vunpack.c.l.b16 %v219
    %v385 = vunpack.c.h.b16 %v219
    %v386 = vunpack.c.l.b16 %v220
    %v387 = vunpack.c.h.b16 %v220
    %v388 = vunpack.c.l.b16 %v221
    %v389 = vunpack.c.h.b16 %v221
    %v390 = vunpack.c.l.b16 %v222
    %v391 = vunpack.c.h.b16 %v222
    %v392 = vunpack.c.l.b16 %v223
    %v393 = vunpack.c.h.b16 %v223
    %v394 = vunpack.c.l.b16 %v224
    %v395 = vunpack.c.h.b16 %v224
    %v396 = vunpack.c.l.b16 %v225
    %v397 = vunpack.c.h.b16 %v225
    %v398 = vunpack.c.l.b16 %v226
    %v399 = vunpack.c.h.b16 %v226
    %v400 = vunpack.c.l.b16 %v227
    %v401 = vunpack.c.h.b16 %v227
    %v402 = vunpack.c.l.b16 %v228
    %v403 = vunpack.c.h.b16 %v228
    %v404 = vunpack.c.l.b16 %v229
    %v405 = vunpack.c.h.b16 %v229
    %v406 = vunpack.c.l.b16 %v230
    %v407 = vunpack.c.h.b16 %v230
    %v408 = vunpack.c.l.b16 %v231
    %v409 = vunpack.c.h.b16 %v231
    %v410 = vunpack.c.l.b16 %v232
    %v411 = vunpack.c.h.b16 %v232
    %v412 = vunpack.c.l.b16 %v233
    %v413 = vunpack.c.h.b16 %v233
    %v414 = vunpack.c.l.b16 %v234
    %v415 = vunpack.c.h.b16 %v234
    %v416 = vunpack.c.l.b16 %v235
    %v417 = vunpack.c.h.b16 %v235
    %v418 = vunpack.c.l.b16 %v236
    %v419 = vunpack.c.h.b16 %v236
    %v420 = vunpack.c.l.b16 %v237
    %v421 = vunpack.c.h.b16 %v237
    %v422 = vunpack.c.l.b16 %v238
    %v423 = vunpack.c.h.b16 %v238
    %v424 = vunpack.c.l.b16 %v239
    %v425 = vunpack.c.h.b16 %v239
    %v426 = vunpack.c.l.b16 %v240
    %v427 = vunpack.c.h.b16 %v240
    %v428 = vunpack.c.l.b16 %v241
    %v429 = vunpack.c.h.b16 %v241
    %v430 = vunpack.c.l.b16 %v242
    %v431 = vunpack.c.h.b16 %v242
    %v432 = vunpack.c.l.b16 %v243
    %v433 = vunpack.c.h.b16 %v243
    %v434 = vunpack.c.l.b16 %v244
    %v435 = vunpack.c.h.b16 %v244
    %v436 = vunpack.c.l.b16 %v245
    %v437 = vunpack.c.h.b16 %v245
    %v438 = vunpack.c.l.b16 %v246
    %v439 = vunpack.c.h.b16 %v246
    %v440 = vunpack.c.l.b16 %v247
    %v441 = vunpack.c.h.b16 %v247
    %v442 = vunpack.c.l.b16 %v248
    %v443 = vunpack.c.h.b16 %v248
    %v444 = vunpack.c.l.b16 %v249
    %v445 = vunpack.c.h.b16 %v249
    %v446 = vunpack.c.l.b16 %v250
    %v447 = vunpack.c.h.b16 %v250
    %v448 = vunpack.c.l.b16 %v251
    %v449 = vunpack.c.h.b16 %v251
    %v450 = vunpack.c.l.b16 %v252
    %v451 = vunpack.c.h.b16 %v252
    %v452 = vunpack.c.l.b16 %v253
    %v453 = vunpack.c.h.b16 %v253
    %v454 = vunpack.c.l.b16 %v254
    %v455 = vunpack.c.h.b16 %v254
    %v456 = vunpack.c.l.b16 %v255
    %v457 = vunpack.c.h.b16 %v255
    %v458 = vunpack.c.l.b16 %v256
    %v459 = vunpack.c.h.b16 %v256
    %v460 = vunpack.c.l.b16 %v257
    %v461 = vunpack.c.h.b16 %v257
    %v462 = vpack.c.b16 %v336, %v334
    %v463 = vpack.c.b16 %v337, %v335
    %v464 = vpack.c.b16 %v340, %v338
    %v465 = vpack.c.b16 %v341, %v339
    %v466 = vpack.c.b16 %v344, %v342
    %v467 = vpack.c.b16 %v345, %v343
    %v468 = vpack.c.b16 %v348, %v346
    %v469 = vpack.c.b16 %v349, %v347
    %v470 = vpack.c.b16 %v352, %v350
    %v471 = vpack.c.b16 %v353, %v351
    %v472 = vpack.c.b16 %v356, %v354
    %v473 = vpack.c.b16 %v357, %v355
    %v474 = vpack.c.b16 %v360, %v358
    %v475 = vpack.c.b16 %v361, %v359
    %v476 = vpack.c.b16 %v364, %v362
    %v477 = vpack.c.b16 %v365, %v363
    %v478 = vpack.c.b16 %v368, %v366
    %v479 = vpack.c.b16 %v369, %v367
    %v480 = vpack.c.b16 %v372, %v370
    %v481 = vpack.c.b16 %v373, %v371
    %v482 = vpack.c.b16 %v376, %v374
    %v483 = vpack.c.b16 %v377, %v375
    %v484 = vpack.c.b16 %v380, %v378
    %v485 = vpack.c.b16 %v381, %v379
    %v486 = vpack.c.b16 %v384, %v382
    %v487 = vpack.c.b16 %v385, %v383
    %v488 = vpack.c.b16 %v388, %v386
    %v489 = vpack.c.b16 %v389, %v387
    %v490 = vpack.c.b16 %v392, %v390
    %v491 = vpack.c.b16 %v393, %v391
    %v492 = vpack.c.b16 %v396, %v394
    %v493 = vpack.c.b16 %v397, %v395
    %v494 = vpack.c.b16 %v400, %v398
    %v495 = vpack.c.b16 %v401, %v399
    %v496 = vpack.c.b16 %v404, %v402
    %v497 = vpack.c.b16 %v405, %v403
    %v498 = vpack.c.b16 %v408, %v406
    %v499 = vpack.c.b16 %v409, %v407
    %v500 = vpack.c.b16 %v412, %v410
    %v501 = vpack.c.b16 %v413, %v411
    %v502 = vpack.c.b16 %v416, %v414
    %v503 = vpack.c.b16 %v417, %v415
    %v504 = vpack.c.b16 %v420, %v418
    %v505 = vpack.c.b16 %v421, %v419
    %v506 = vpack.c.b16 %v424, %v422
    %v507 = vpack.c.b16 %v425, %v423
    %v508 = vpack.c.b16 %v428, %v426
    %v509 = vpack.c.b16 %v429, %v427
    %v510 = vpack.c.b16 %v432, %v430
    %v511 = vpack.c.b16 %v433, %v431
    %v512 = vpack.c.b16 %v436, %v434
    %v513 = vpack.c.b16 %v437, %v435
    %v514 = vpack.c.b16 %v440, %v438
    %v515 = vpack.c.b16 %v441, %v439
    %v516 = vpack.c.b16 %v444, %v442
    %v517 = vpack.c.b16 %v445, %v443
    %v518 = vpack.c.b16 %v448, %v446
    %v519 = vpack.c.b16 %v449, %v447
    %v520 = vpack.c.b16 %v452, %v450
    %v521 = vpack.c.b16 %v453, %v451
    %v522 = vpack.c.b16 %v456, %v454
    %v523 = vpack.c.b16 %v457, %v455
    %v524 = vpack.c.b16 %v460, %v458
    %v525 = vpack.c.b16 %v461, %v459
    %590 = vmatprep.subr.bf16.mxu0 %v477
    %591 = vmatpush1.bf16.msra.mxu0 %v476
    %592 = vmatprep.subr.bf16.mxu0 %v475
    %593 = vmatpush1.bf16.msra.mxu0 %v474
    %594 = vmatprep.subr.bf16.mxu0 %v473
    %595 = vmatpush1.bf16.msra.mxu0 %v472
    %596 = vmatprep.subr.bf16.mxu0 %v471
    %597 = vmatpush1.bf16.msra.mxu0 %v470
    %598 = vmatprep.subr.bf16.mxu0 %v469
    %599 = vmatpush1.bf16.msra.mxu0 %v468
    %600 = vmatprep.subr.bf16.mxu0 %v467
    %601 = vmatpush1.bf16.msra.mxu0 %v466
    %602 = vmatprep.subr.bf16.mxu0 %v465
    %603 = vmatpush1.bf16.msra.mxu0 %v464
    %604 = vmatprep.subr.bf16.mxu0 %v463
    %605 = vmatpush1.bf16.msra.mxu0 %v462
    %606 = vmatprep.subr.bf16.mxu0 %v493
    %607 = vmatpush2.bf16.msra.mxu0 %v492
    %608 = vmatprep.subr.bf16.mxu0 %v491
    %609 = vmatpush2.bf16.msra.mxu0 %v490
    %610 = vmatprep.subr.bf16.mxu0 %v489
    %611 = vmatpush2.bf16.msra.mxu0 %v488
    %612 = vmatprep.subr.bf16.mxu0 %v487
    %613 = vmatpush2.bf16.msra.mxu0 %v486
    %614 = vmatprep.subr.bf16.mxu0 %v485
    %615 = vmatpush2.bf16.msra.mxu0 %v484
    %616 = vmatprep.subr.bf16.mxu0 %v483
    %617 = vmatpush2.bf16.msra.mxu0 %v482
    %618 = vmatprep.subr.bf16.mxu0 %v481
    %619 = vmatpush2.bf16.msra.mxu0 %v480
    %620 = vmatprep.subr.bf16.mxu0 %v479
    %621 = vmatpush2.bf16.msra.mxu0 %v478
    %622 = vmatprep.mubr.bf16.mxu0 %v191
    %623 = vmatmul.mubr.bf16.gmra.mxu0 %v190
    %v624 = vpop.f32.mrf.mxu0
    %v625 = vadd.f32 %v263, %v624
    %v626 = vpop.f32.mrf.mxu0
    %v627 = vadd.f32 %v267, %v626
    %v628 = vpop.f32.mrf.mxu0
    %v629 = vpop.f32.mrf.mxu0
    %630 = vdwg.mxu0
    %631 = vmatprep.subr.bf16.mxu0 %v509
    %632 = vmatpush1.bf16.msra.mxu0 %v508
    %633 = vmatprep.subr.bf16.mxu0 %v507
    %634 = vmatpush1.bf16.msra.mxu0 %v506
    %635 = vmatprep.subr.bf16.mxu0 %v505
    %636 = vmatpush1.bf16.msra.mxu0 %v504
    %637 = vmatprep.subr.bf16.mxu0 %v503
    %638 = vmatpush1.bf16.msra.mxu0 %v502
    %639 = vmatprep.subr.bf16.mxu0 %v501
    %640 = vmatpush1.bf16.msra.mxu0 %v500
    %641 = vmatprep.subr.bf16.mxu0 %v499
    %642 = vmatpush1.bf16.msra.mxu0 %v498
    %643 = vmatprep.subr.bf16.mxu0 %v497
    %644 = vmatpush1.bf16.msra.mxu0 %v496
    %645 = vmatprep.subr.bf16.mxu0 %v495
    %646 = vmatpush1.bf16.msra.mxu0 %v494
    %647 = vmatprep.subr.bf16.mxu0 %v525
    %648 = vmatpush2.bf16.msra.mxu0 %v524
    %649 = vmatprep.subr.bf16.mxu0 %v523
    %650 = vmatpush2.bf16.msra.mxu0 %v522
    %651 = vmatprep.subr.bf16.mxu0 %v521
    %652 = vmatpush2.bf16.msra.mxu0 %v520
    %653 = vmatprep.subr.bf16.mxu0 %v519
    %654 = vmatpush2.bf16.msra.mxu0 %v518
    %655 = vmatprep.subr.bf16.mxu0 %v517
    %656 = vmatpush2.bf16.msra.mxu0 %v516
    %657 = vmatprep.subr.bf16.mxu0 %v515
    %658 = vmatpush2.bf16.msra.mxu0 %v514
    %659 = vmatprep.subr.bf16.mxu0 %v513
    %660 = vmatpush2.bf16.msra.mxu0 %v512
    %661 = vmatprep.subr.bf16.mxu0 %v511
    %662 = vmatpush2.bf16.msra.mxu0 %v510
    %663 = vmatprep.mubr.bf16.mxu0 %v193
    %664 = vmatmul.mubr.bf16.gmra.mxu0 %v192
    %v665 = vpop.f32.mrf.mxu0
    %v666 = vadd.f32 %v625, %v665
    %v667 = vpop.f32.mrf.mxu0
    %v668 = vadd.f32 %v627, %v667
    %v669 = vpop.f32.mrf.mxu0
    %v670 = vpop.f32.mrf.mxu0
    %671 = vdwg.mxu0
    %v672 = vmax.f32 %v666, 0.0
    %v673 = vmax.f32 %v668, 0.0
    %v674 = vpack.c.bf16 %v672, %v672
    %v675 = vpack.c.bf16 %v673, %v673
    %v676 = vld [vmem:[%s5] sm:$0xf]
    %v677 = vld [vmem:[%s5 + $0x4] sm:$0xf]
    %v678 = vld [vmem:[%s5 + $0x8] sm:$0xf]
    %v679 = vld [vmem:[%s5 + $0xc] sm:$0xf]
    %v680 = vld [vmem:[%s5 + $0x10] sm:$0xf]
    %v681 = vld [vmem:[%s5 + $0x14] sm:$0xf]
    %v682 = vld [vmem:[%s5 + $0x18] sm:$0xf]
    %v683 = vld [vmem:[%s5 + $0x1c] sm:$0xf]
    %v684 = vld [vmem:[%s5 + $0x20] sm:$0xf]
    %v685 = vld [vmem:[%s5 + $0x24] sm:$0xf]
    %v686 = vld [vmem:[%s5 + $0x28] sm:$0xf]
    %v687 = vld [vmem:[%s5 + $0x2c] sm:$0xf]
    %v688 = vld [vmem:[%s5 + $0x30] sm:$0xf]
    %v689 = vld [vmem:[%s5 + $0x34] sm:$0xf]
    %v690 = vld [vmem:[%s5 + $0x38] sm:$0xf]
    %v691 = vld [vmem:[%s5 + $0x3c] sm:$0xf]
    %v692 = vld [vmem:[%s5 + $0x40] sm:$0xf]
    %v693 = vld [vmem:[%s5 + $0x44] sm:$0xf]
    %v694 = vld [vmem:[%s5 + $0x48] sm:$0xf]
    %v695 = vld [vmem:[%s5 + $0x4c] sm:$0xf]
    %v696 = vld [vmem:[%s5 + $0x50] sm:$0xf]
    %v697 = vld [vmem:[%s5 + $0x54] sm:$0xf]
    %v698 = vld [vmem:[%s5 + $0x58] sm:$0xf]
    %v699 = vld [vmem:[%s5 + $0x5c] sm:$0xf]
    %v700 = vld [vmem:[%s5 + $0x60] sm:$0xf]
    %v701 = vld [vmem:[%s5 + $0x64] sm:$0xf]
    %v702 = vld [vmem:[%s5 + $0x68] sm:$0xf]
    %v703 = vld [vmem:[%s5 + $0x6c] sm:$0xf]
    %v704 = vld [vmem:[%s5 + $0x70] sm:$0xf]
    %v705 = vld [vmem:[%s5 + $0x74] sm:$0xf]
    %v706 = vld [vmem:[%s5 + $0x78] sm:$0xf]
    %v707 = vld [vmem:[%s5 + $0x7c] sm:$0xf]
    %v708 = vld [vmem:[%s6] sm:$0x1]
    %v710 = vlaneseq
    %v711 = vshrl.u32 %v710, 7
    %v712 = vsub.s32 0, %v711
    %v713 = vrot.slane %v708, %v712
    %v747 = vunpack.c.l.b16 %v676
    %v748 = vunpack.c.l.b16 %v677
    %v749 = vunpack.c.l.b16 %v678
    %v750 = vunpack.c.l.b16 %v679
    %v751 = vunpack.c.l.b16 %v680
    %v752 = vunpack.c.l.b16 %v681
    %v753 = vunpack.c.l.b16 %v682
    %v754 = vunpack.c.l.b16 %v683
    %v755 = vunpack.c.l.b16 %v684
    %v756 = vunpack.c.l.b16 %v685
    %v757 = vunpack.c.l.b16 %v686
    %v758 = vunpack.c.l.b16 %v687
    %v759 = vunpack.c.l.b16 %v688
    %v760 = vunpack.c.l.b16 %v689
    %v761 = vunpack.c.l.b16 %v690
    %v762 = vunpack.c.l.b16 %v691
    %v763 = vunpack.c.l.b16 %v692
    %v764 = vunpack.c.l.b16 %v693
    %v765 = vunpack.c.l.b16 %v694
    %v766 = vunpack.c.l.b16 %v695
    %v767 = vunpack.c.l.b16 %v696
    %v768 = vunpack.c.l.b16 %v697
    %v769 = vunpack.c.l.b16 %v698
    %v770 = vunpack.c.l.b16 %v699
    %v771 = vunpack.c.l.b16 %v700
    %v772 = vunpack.c.l.b16 %v701
    %v773 = vunpack.c.l.b16 %v702
    %v774 = vunpack.c.l.b16 %v703
    %v775 = vunpack.c.l.b16 %v704
    %v776 = vunpack.c.l.b16 %v705
    %v777 = vunpack.c.l.b16 %v706
    %v778 = vunpack.c.l.b16 %v707
    %v779 = vpack.c.b16 %v748, %v747
    %v780 = vpack.c.b16 %v750, %v749
    %v781 = vpack.c.b16 %v752, %v751
    %v782 = vpack.c.b16 %v754, %v753
    %v783 = vpack.c.b16 %v756, %v755
    %v784 = vpack.c.b16 %v758, %v757
    %v785 = vpack.c.b16 %v760, %v759
    %v786 = vpack.c.b16 %v762, %v761
    %v787 = vpack.c.b16 %v764, %v763
    %v788 = vpack.c.b16 %v766, %v765
    %v789 = vpack.c.b16 %v768, %v767
    %v790 = vpack.c.b16 %v770, %v769
    %v791 = vpack.c.b16 %v772, %v771
    %v792 = vpack.c.b16 %v774, %v773
    %v793 = vpack.c.b16 %v776, %v775
    %v794 = vpack.c.b16 %v778, %v777
    %811 = vmatprep.subr.bf16.mxu0 0
    %812 = vmatpush1.bf16.msra.mxu0 %v786
    %813 = vmatprep.subr.bf16.mxu0 0
    %814 = vmatpush1.bf16.msra.mxu0 %v785
    %815 = vmatprep.subr.bf16.mxu0 0
    %816 = vmatpush1.bf16.msra.mxu0 %v784
    %817 = vmatprep.subr.bf16.mxu0 0
    %818 = vmatpush1.bf16.msra.mxu0 %v783
    %819 = vmatprep.subr.bf16.mxu0 0
    %820 = vmatpush1.bf16.msra.mxu0 %v782
    %821 = vmatprep.subr.bf16.mxu0 0
    %822 = vmatpush1.bf16.msra.mxu0 %v781
    %823 = vmatprep.subr.bf16.mxu0 0
    %824 = vmatpush1.bf16.msra.mxu0 %v780
    %825 = vmatprep.subr.bf16.mxu0 0
    %826 = vmatpush1.bf16.msra.mxu0 %v779
    %827 = vmatprep.subr.bf16.mxu0 0
    %828 = vmatpush2.bf16.msra.mxu0 %v794
    %829 = vmatprep.subr.bf16.mxu0 0
    %830 = vmatpush2.bf16.msra.mxu0 %v793
    %831 = vmatprep.subr.bf16.mxu0 0
    %832 = vmatpush2.bf16.msra.mxu0 %v792
    %833 = vmatprep.subr.bf16.mxu0 0
    %834 = vmatpush2.bf16.msra.mxu0 %v791
    %835 = vmatprep.subr.bf16.mxu0 0
    %836 = vmatpush2.bf16.msra.mxu0 %v790
    %837 = vmatprep.subr.bf16.mxu0 0
    %838 = vmatpush2.bf16.msra.mxu0 %v789
    %839 = vmatprep.subr.bf16.mxu0 0
    %840 = vmatpush2.bf16.msra.mxu0 %v788
    %841 = vmatprep.subr.bf16.mxu0 0
    %842 = vmatpush2.bf16.msra.mxu0 %v787
    %843 = vmatprep.mubr.bf16.mxu0 %v675
    %844 = vmatmul.mubr.bf16.gmra.mxu0 %v674
    %v845 = vpop.f32.mrf.mxu0
    %v846 = vadd.f32 %v713, %v845
    %v847 = vpop.f32.mrf.mxu0
    %v848 = vpop.f32.mrf.mxu0
    %v849 = vpop.f32.mrf.mxu0
    %850 = vdwg.mxu0
    %v851 = vxor.u32 %v846, 2147483648
    %v852 = vmul.f32 %v851, 1.442695
    %v853 = vpow.pop %v852
    %v854 = vadd.f32 %v853, 1.0
    %v855 = vrcp.pop %v854
    %v856 = vmul.f32 1.0, %v855
    %vm857 = vcmask 130048
    %858 = vst.msk [vmem:[#allocation2] sm:$0xff] %vm857, %v856
    // Predicated region
    $region30: #{mlp_forward.1} parent=1 // pred_check
      _
    $region31: #{mlp_forward.1} parent=1 // pred_check_branch
      %860 = sbr.rel (0) target = $region33
    $region32: #{mlp_forward.1} parent=1 // pred_region
      %s862 = ssub.s32 128, 128
      %863 = vsyncadd [#allocation3], %s862
      %s865 = sshll.u32 [#allocation2], 4
      %s866 = int_to_ptr.vmem [resolvable:$true] %s865
      %868 = dma.vmem_to_hbm [thread:$0]  %s866, 128, %s7, [#allocation3]
    $region33: #{mlp_forward.1} parent=1 // pred_fallthru
      _
    // Predicated region
    $region34: #{mlp_forward.1} parent=1 // pred_check
      _
    $region35: #{mlp_forward.1} parent=1 // pred_check_branch
      %870 = sbr.rel (0) target = $region37
    $region36: #{mlp_forward.1} parent=1 // pred_region
      %871 = dma.done [#allocation3], 128
    $region37: #{mlp_forward.1} parent=1 // pred_fallthru
      _
    %872 = vsyncpa [#allocation3], 1

</llo_original>
